<compile_context>
chip_gen: v5e
topology: v5e:2x2
jax: 0.10.0
libtpu: 0.0.40
codegen_flags: <defaults>
</compile_context>

<pallas_src>
import functools

import jax
import jax.numpy as jnp
from jax.experimental import pallas as pl
from jax.experimental.pallas import tpu as pltpu


def gin_fused_kernel(a_ref, h_ref, w1_ref, b1_ref, w2_ref, b2_ref, o_ref, *,
                     num_layers):
    """All GIN layers for one graph, fully resident in VMEM.

    a_ref : (N, N)    A' = I + A   (A[i, j] = 1 for edge j -> i, identity folded)
    h_ref : (N, F)    input node features
    w1_ref: (L, F, H) stacked first-linear weights  (x @ W form)
    b1_ref: (L, 1, H) stacked first-linear biases
    w2_ref: (L, H, H) stacked second-linear weights
    b2_ref: (L, 1, H) stacked second-linear biases
    o_ref : (N, H)    output node features
    """
    a = a_ref[...]
    h = h_ref[...]
    for l in range(num_layers):  # static unroll: h never leaves the chip
        # GIN 'sum' aggregation with eps=0, identity folded in:  (I + A) @ h
        agg = jnp.dot(a, h, preferred_element_type=jnp.float32)
        # MLP: Linear -> ReLU -> Linear -> ReLU   (bias/ReLU on VPU, overlaps MXU)
        z1 = jnp.dot(agg, w1_ref[l], preferred_element_type=jnp.float32) + b1_ref[l]
        z1 = jnp.maximum(z1, 0.0)
        h = jnp.dot(z1, w2_ref[l], preferred_element_type=jnp.float32) + b2_ref[l]
        h = jnp.maximum(h, 0.0)
    o_ref[...] = h.astype(o_ref.dtype)


@jax.jit
def gin_forward(adj, features, w1s, b1s, w2s, b2s):
    """GIN.forward (do_train=False). adj: (G,N,N) 0/1, features: (G,N,F).

    Weights are stacked along a leading layer axis:
      w1s: (L,F,H)  b1s: (L,1,H)  w2s: (L,H,H)  b2s: (L,1,H)
    """
    G, N, _ = adj.shape
    L, F, H = w1s.shape

    # Pre-fold the (1 + eps) * h self-term into the adjacency:  A' = I + A.
    adj_hat = adj + jnp.eye(N, dtype=adj.dtype)[None]

    flops = 2 * G * L * (N * N * F + N * F * H + N * H * H)
    bytes_accessed = 4 * (G * N * N + G * N * F + G * N * H
                          + L * (F * H + H + H * H + H))

    kernel = functools.partial(gin_fused_kernel, num_layers=L)
    return pl.pallas_call(
        kernel,
        out_shape=jax.ShapeDtypeStruct((G, N, H), jnp.float32),
        grid=(G,),
        in_specs=[
            # per-graph blocks (graph dim squeezed out of the kernel view)
            pl.BlockSpec((None, N, N), lambda g: (g, 0, 0)),   # A' for graph g
            pl.BlockSpec((None, N, F), lambda g: (g, 0, 0)),   # features graph g
            # weights: same block every grid step -> stay resident in VMEM
            pl.BlockSpec((L, F, H), lambda g: (0, 0, 0)),
            pl.BlockSpec((L, 1, H), lambda g: (0, 0, 0)),
            pl.BlockSpec((L, H, H), lambda g: (0, 0, 0)),
            pl.BlockSpec((L, 1, H), lambda g: (0, 0, 0)),
        ],
        out_specs=pl.BlockSpec((None, N, H), lambda g: (g, 0, 0)),
        compiler_params=pltpu.CompilerParams(
            # graph axis is embarrassingly parallel -> megacore on v7x
            dimension_semantics=("parallel",),
        ),
        cost_estimate=pl.CostEstimate(
            flops=flops, transcendentals=0, bytes_accessed=bytes_accessed),
    )(adj_hat, features, w1s, b1s, w2s, b2s)


def init_params(key, in_feats, out_feats, num_layers):
    """Deterministic synthetic parameters, stacked along a layer axis."""
    w1s, b1s, w2s, b2s = [], [], [], []
    for _ in range(num_layers):
        key, k1, k2, k3, k4 = jax.random.split(key, 5)
        # stored as (in, out) so the kernel does x @ W  (== PyTorch x @ W.T)
        w1s.append(jax.random.normal(k1, (in_feats, out_feats), jnp.float32) * 0.1)
        b1s.append(jax.random.normal(k2, (1, out_feats), jnp.float32) * 0.1)
        w2s.append(jax.random.normal(k3, (out_feats, out_feats), jnp.float32) * 0.1)
        b2s.append(jax.random.normal(k4, (1, out_feats), jnp.float32) * 0.1)
    return (jnp.stack(w1s), jnp.stack(b1s), jnp.stack(w2s), jnp.stack(b2s))
    # TODO(synk): predict = Linear(out_feats, 1) is only used when do_train=True;
    # the default forward returns h, so it is intentionally not materialized.


if __name__ == "__main__":
    G = 2             # graphs per call (leading "parallel" grid axis)
    N = 128           # nodes per graph  (fills sublanes / MXU rows)
    IN_FEATS = 128    # lane-dense; must equal OUT_FEATS (see NOTE above)
    OUT_FEATS = 128
    NUM_LAYERS = 2

    root = jax.random.PRNGKey(0)
    k_adj, k_feat, k_par = jax.random.split(root, 3)

    # deterministic random graphs: ~30% edge density, no self loops
    adj = (jax.random.uniform(k_adj, (G, N, N)) < 0.3).astype(jnp.float32)
    adj = adj * (1.0 - jnp.eye(N, dtype=jnp.float32))[None]

    features = jax.random.normal(k_feat, (G, N, IN_FEATS), jnp.float32)
    w1s, b1s, w2s, b2s = init_params(k_par, IN_FEATS, OUT_FEATS, NUM_LAYERS)

    out = gin_forward(adj, features, w1s, b1s, w2s, b2s)
    out = jax.block_until_ready(out)

    # reference check in plain JAX (same math as the PyTorch module)
    h_ref = features
    for l in range(NUM_LAYERS):
        agg = h_ref + jnp.einsum("gij,gjf->gif", adj, h_ref)
        h_ref = jnp.maximum(jnp.einsum("gnf,fh->gnh", agg, w1s[l]) + b1s[l], 0.0)
        h_ref = jnp.maximum(jnp.einsum("gnh,hk->gnk", h_ref, w2s[l]) + b2s[l], 0.0)

    assert out.shape == (G, N, OUT_FEATS)
    err = jnp.max(jnp.abs(out - h_ref))
    assert jnp.allclose(out, h_ref, atol=1e-2, rtol=2e-3), f"max abs err {err}"

    print("KERNEL_OK")
</pallas_src>

<mosaic_0001>
module attributes {stable_mosaic.version = 11 : i64} {
  func.func @gin_fused_kernel(%arg0: i32, %arg1: memref<1x128x128xf32, #tpu.memory_space<vmem>>, %arg2: memref<1x128x128xf32, #tpu.memory_space<vmem>>, %arg3: memref<2x128x128xf32, #tpu.memory_space<vmem>>, %arg4: memref<2x1x128xf32, #tpu.memory_space<vmem>>, %arg5: memref<2x128x128xf32, #tpu.memory_space<vmem>>, %arg6: memref<2x1x128xf32, #tpu.memory_space<vmem>>, %arg7: memref<1x128x128xf32, #tpu.memory_space<vmem>>) attributes {dimension_semantics = [#tpu.dimension_semantics<parallel>], iteration_bounds = array<i64: 2>, scalar_prefetch = 0 : i64, scratch_operands = 0 : i64, tpu.core_type = #tpu.core_type<tc>, window_params = [{transform_indices = @transform_0, window_bounds = array<i64: 1, 128, 128>}, {transform_indices = @transform_1, window_bounds = array<i64: 1, 128, 128>}, {pipeline_mode = #tpu.pipeline_mode<synchronous>, transform_indices = @transform_2, window_bounds = array<i64: 2, 128, 128>}, {pipeline_mode = #tpu.pipeline_mode<synchronous>, transform_indices = @transform_3, window_bounds = array<i64: 2, 1, 128>}, {pipeline_mode = #tpu.pipeline_mode<synchronous>, transform_indices = @transform_4, window_bounds = array<i64: 2, 128, 128>}, {pipeline_mode = #tpu.pipeline_mode<synchronous>, transform_indices = @transform_5, window_bounds = array<i64: 2, 1, 128>}, {transform_indices = @transform_6, window_bounds = array<i64: 1, 128, 128>}]} {
    %c0 = arith.constant 0 : index
    %c0_0 = arith.constant 0 : index
    %c0_1 = arith.constant 0 : index
    %0 = vector.load %arg1[%c0, %c0_0, %c0_1] : memref<1x128x128xf32, #tpu.memory_space<vmem>>, vector<1x128x128xf32>
    %1 = vector.shape_cast %0 : vector<1x128x128xf32> to vector<128x128xf32>
    %c0_2 = arith.constant 0 : index
    %c0_3 = arith.constant 0 : index
    %c0_4 = arith.constant 0 : index
    %2 = vector.load %arg2[%c0_2, %c0_3, %c0_4] : memref<1x128x128xf32, #tpu.memory_space<vmem>>, vector<1x128x128xf32>
    %3 = vector.shape_cast %2 : vector<1x128x128xf32> to vector<128x128xf32>
    %cst = arith.constant dense<0.000000e+00> : vector<128x128xf32>
    %4 = tpu.matmul %1, %3, %cst {dimension_numbers = #tpu.dot_dimension_numbers<[1], [0], [0], [1], [0, 0, 1, 1], [], []>} : vector<128x128xf32>, vector<128x128xf32>, vector<128x128xf32> -> vector<128x128xf32>
    %c0_5 = arith.constant 0 : index
    %c0_6 = arith.constant 0 : index
    %c0_7 = arith.constant 0 : index
    %5 = vector.load %arg3[%c0_5, %c0_6, %c0_7] : memref<2x128x128xf32, #tpu.memory_space<vmem>>, vector<1x128x128xf32>
    %6 = vector.shape_cast %5 : vector<1x128x128xf32> to vector<128x128xf32>
    %cst_8 = arith.constant dense<0.000000e+00> : vector<128x128xf32>
    %7 = tpu.matmul %4, %6, %cst_8 {dimension_numbers = #tpu.dot_dimension_numbers<[1], [0], [0], [1], [0, 0, 1, 1], [], []>} : vector<128x128xf32>, vector<128x128xf32>, vector<128x128xf32> -> vector<128x128xf32>
    %c0_9 = arith.constant 0 : index
    %c0_10 = arith.constant 0 : index
    %c0_11 = arith.constant 0 : index
    %8 = vector.load %arg4[%c0_9, %c0_10, %c0_11] : memref<2x1x128xf32, #tpu.memory_space<vmem>>, vector<1x1x128xf32>
    %9 = vector.shape_cast %8 : vector<1x1x128xf32> to vector<1x128xf32>
    %10 = vector.broadcast %9 : vector<1x128xf32> to vector<128x128xf32>
    %11 = arith.addf %7, %10 : vector<128x128xf32>
    %cst_12 = arith.constant 0.000000e+00 : f32
    %12 = vector.broadcast %cst_12 : f32 to vector<128x128xf32>
    %13 = arith.maximumf %11, %12 : vector<128x128xf32>
    %c0_13 = arith.constant 0 : index
    %c0_14 = arith.constant 0 : index
    %c0_15 = arith.constant 0 : index
    %14 = vector.load %arg5[%c0_13, %c0_14, %c0_15] : memref<2x128x128xf32, #tpu.memory_space<vmem>>, vector<1x128x128xf32>
    %15 = vector.shape_cast %14 : vector<1x128x128xf32> to vector<128x128xf32>
    %cst_16 = arith.constant dense<0.000000e+00> : vector<128x128xf32>
    %16 = tpu.matmul %13, %15, %cst_16 {dimension_numbers = #tpu.dot_dimension_numbers<[1], [0], [0], [1], [0, 0, 1, 1], [], []>} : vector<128x128xf32>, vector<128x128xf32>, vector<128x128xf32> -> vector<128x128xf32>
    %c0_17 = arith.constant 0 : index
    %c0_18 = arith.constant 0 : index
    %c0_19 = arith.constant 0 : index
    %17 = vector.load %arg6[%c0_17, %c0_18, %c0_19] : memref<2x1x128xf32, #tpu.memory_space<vmem>>, vector<1x1x128xf32>
    %18 = vector.shape_cast %17 : vector<1x1x128xf32> to vector<1x128xf32>
    %19 = vector.broadcast %18 : vector<1x128xf32> to vector<128x128xf32>
    %20 = arith.addf %16, %19 : vector<128x128xf32>
    %cst_20 = arith.constant 0.000000e+00 : f32
    %21 = vector.broadcast %cst_20 : f32 to vector<128x128xf32>
    %22 = arith.maximumf %20, %21 : vector<128x128xf32>
    %cst_21 = arith.constant dense<0.000000e+00> : vector<128x128xf32>
    %23 = tpu.matmul %1, %22, %cst_21 {dimension_numbers = #tpu.dot_dimension_numbers<[1], [0], [0], [1], [0, 0, 1, 1], [], []>} : vector<128x128xf32>, vector<128x128xf32>, vector<128x128xf32> -> vector<128x128xf32>
    %c1 = arith.constant 1 : index
    %c0_22 = arith.constant 0 : index
    %c0_23 = arith.constant 0 : index
    %24 = vector.load %arg3[%c1, %c0_22, %c0_23] : memref<2x128x128xf32, #tpu.memory_space<vmem>>, vector<1x128x128xf32>
    %25 = vector.shape_cast %24 : vector<1x128x128xf32> to vector<128x128xf32>
    %cst_24 = arith.constant dense<0.000000e+00> : vector<128x128xf32>
    %26 = tpu.matmul %23, %25, %cst_24 {dimension_numbers = #tpu.dot_dimension_numbers<[1], [0], [0], [1], [0, 0, 1, 1], [], []>} : vector<128x128xf32>, vector<128x128xf32>, vector<128x128xf32> -> vector<128x128xf32>
    %c1_25 = arith.constant 1 : index
    %c0_26 = arith.constant 0 : index
    %c0_27 = arith.constant 0 : index
    %27 = vector.load %arg4[%c1_25, %c0_26, %c0_27] : memref<2x1x128xf32, #tpu.memory_space<vmem>>, vector<1x1x128xf32>
    %28 = vector.shape_cast %27 : vector<1x1x128xf32> to vector<1x128xf32>
    %29 = vector.broadcast %28 : vector<1x128xf32> to vector<128x128xf32>
    %30 = arith.addf %26, %29 : vector<128x128xf32>
    %cst_28 = arith.constant 0.000000e+00 : f32
    %31 = vector.broadcast %cst_28 : f32 to vector<128x128xf32>
    %32 = arith.maximumf %30, %31 : vector<128x128xf32>
    %c1_29 = arith.constant 1 : index
    %c0_30 = arith.constant 0 : index
    %c0_31 = arith.constant 0 : index
    %33 = vector.load %arg5[%c1_29, %c0_30, %c0_31] : memref<2x128x128xf32, #tpu.memory_space<vmem>>, vector<1x128x128xf32>
    %34 = vector.shape_cast %33 : vector<1x128x128xf32> to vector<128x128xf32>
    %cst_32 = arith.constant dense<0.000000e+00> : vector<128x128xf32>
    %35 = tpu.matmul %32, %34, %cst_32 {dimension_numbers = #tpu.dot_dimension_numbers<[1], [0], [0], [1], [0, 0, 1, 1], [], []>} : vector<128x128xf32>, vector<128x128xf32>, vector<128x128xf32> -> vector<128x128xf32>
    %c1_33 = arith.constant 1 : index
    %c0_34 = arith.constant 0 : index
    %c0_35 = arith.constant 0 : index
    %36 = vector.load %arg6[%c1_33, %c0_34, %c0_35] : memref<2x1x128xf32, #tpu.memory_space<vmem>>, vector<1x1x128xf32>
    %37 = vector.shape_cast %36 : vector<1x1x128xf32> to vector<1x128xf32>
    %38 = vector.broadcast %37 : vector<1x128xf32> to vector<128x128xf32>
    %39 = arith.addf %35, %38 : vector<128x128xf32>
    %cst_36 = arith.constant 0.000000e+00 : f32
    %40 = vector.broadcast %cst_36 : f32 to vector<128x128xf32>
    %41 = arith.maximumf %39, %40 : vector<128x128xf32>
    %c0_37 = arith.constant 0 : index
    %c0_38 = arith.constant 0 : index
    %c0_39 = arith.constant 0 : index
    %42 = vector.load %arg7[%c0_37, %c0_38, %c0_39] : memref<1x128x128xf32, #tpu.memory_space<vmem>>, vector<1x128x128xf32>
    %43 = vector.shape_cast %42 : vector<1x128x128xf32> to vector<128x128xf32>
    %44 = vector.shape_cast %41 : vector<128x128xf32> to vector<1x128x128xf32>
    tpu.vector_store %arg7[%c0_37, %c0_38, %c0_39], %44 {strides = array<i32>} : memref<1x128x128xf32, #tpu.memory_space<vmem>>, vector<1x128x128xf32>,
    return
  }
  func.func @transform_0(%arg0: i32) -> (i32, i32, i32) {
    %c0_i32 = arith.constant 0 : i32
    %c0_i32_0 = arith.constant 0 : i32
    %c0_i32_1 = arith.constant 0 : i32
    return %arg0, %c0_i32, %c0_i32_0 : i32, i32, i32
  }
  func.func @transform_1(%arg0: i32) -> (i32, i32, i32) {
    %c0_i32 = arith.constant 0 : i32
    %c0_i32_0 = arith.constant 0 : i32
    %c0_i32_1 = arith.constant 0 : i32
    return %arg0, %c0_i32, %c0_i32_0 : i32, i32, i32
  }
  func.func @transform_2(%arg0: i32) -> (i32, i32, i32) {
    %c0_i32 = arith.constant 0 : i32
    %c0_i32_0 = arith.constant 0 : i32
    %c0_i32_1 = arith.constant 0 : i32
    %c0_i32_2 = arith.constant 0 : i32
    return %c0_i32, %c0_i32_0, %c0_i32_1 : i32, i32, i32
  }
  func.func @transform_3(%arg0: i32) -> (i32, i32, i32) {
    %c0_i32 = arith.constant 0 : i32
    %c0_i32_0 = arith.constant 0 : i32
    %c0_i32_1 = arith.constant 0 : i32
    %c0_i32_2 = arith.constant 0 : i32
    return %c0_i32, %c0_i32_0, %c0_i32_1 : i32, i32, i32
  }
  func.func @transform_4(%arg0: i32) -> (i32, i32, i32) {
    %c0_i32 = arith.constant 0 : i32
    %c0_i32_0 = arith.constant 0 : i32
    %c0_i32_1 = arith.constant 0 : i32
    %c0_i32_2 = arith.constant 0 : i32
    return %c0_i32, %c0_i32_0, %c0_i32_1 : i32, i32, i32
  }
  func.func @transform_5(%arg0: i32) -> (i32, i32, i32) {
    %c0_i32 = arith.constant 0 : i32
    %c0_i32_0 = arith.constant 0 : i32
    %c0_i32_1 = arith.constant 0 : i32
    %c0_i32_2 = arith.constant 0 : i32
    return %c0_i32, %c0_i32_0, %c0_i32_1 : i32, i32, i32
  }
  func.func @transform_6(%arg0: i32) -> (i32, i32, i32) {
    %c0_i32 = arith.constant 0 : i32
    %c0_i32_0 = arith.constant 0 : i32
    %c0_i32_1 = arith.constant 0 : i32
    return %arg0, %c0_i32, %c0_i32_0 : i32, i32, i32
  }
}

</mosaic_0001>

<llo_original>
// kernel: gin_forward.1
$region0: #{gin_forward.1}
  #allocation0 [shape = 'u32[]', space=smem, size = 0x4, offset = 0x4, fixed_abs, tag = 'smem constant byte address 0x4 - core index']
  #allocation1 [shape = 'u32[72,128]{1,0:T(1,128)}', space=vmem, size = 0x9000, scoped, tag = 'internal scratch']
  %s0 = inlined_call_operand.vmem [shape: f32[2,128,128], index: 0, kind: input, shape index: {}]
  %s1 = inlined_call_operand.vmem [shape: f32[2,128,128], index: 1, kind: input, shape index: {}]
  %s2 = inlined_call_operand.vmem [shape: f32[2,128,128], index: 2, kind: input, shape index: {}]
  %s3 = inlined_call_operand.hbm [shape: f32[2,1,128], index: 3, kind: input, shape index: {}]
  %s4 = inlined_call_operand.vmem [shape: f32[2,128,128], index: 4, kind: input, shape index: {}]
  %s5 = inlined_call_operand.hbm [shape: f32[2,1,128], index: 5, kind: input, shape index: {}]
  %s6 = inlined_call_operand.hbm [shape: f32[2,128,128], index: 6, kind: output, shape index: {}]
  %s7 = sld [smem:[#allocation0]]
  $region65: #{gin_forward.1} parent=0
    _
  %s9 = ssub.s32 1, %s7
  %s10 = scalar_select 0, %s9, %s7
  $region1: #{gin_forward.1} parent=0
    #allocation2 [shape = 'u8[1024]{0}', space=vmem, size = 0x400, scoped, tag = 'input window, operand 3, single buffered']
    #allocation3 [shape = 's32[2]{0}', space=sflag, size = 0x8, scoped, tag = 'scoped memory for gin_forward.1']
    #allocation4 [shape = 's32[2]{0}', space=sflag, size = 0x8, scoped, tag = 'scoped memory for gin_forward.1']
    #allocation5 [shape = 'u8[1024]{0}', space=vmem, size = 0x400, scoped, tag = 'input window, operand 5, single buffered']
    #allocation6 [shape = 's32[1]{0}', space=sflag, size = 0x4, scoped, tag = 'scoped memory for gin_forward.1']
    #allocation7 [shape = 'u8[131072]{0}', space=vmem, size = 0x20000, scoped, tag = 'output window, operand 0']
    %11 = vsyncpa [#allocation3], 0
    %12 = vsyncpa [#allocation6], 0
    %13 = vsyncpa [#allocation4], 0
    %s14 = scalar_lea.sflag [#allocation4], 1
    %15 = vsyncpa %s14, 0
    loop: start=0, step=1, limit=4
    $region2: #{gin_forward.1} parent=1 // loop_pre_header
      _
    $region3: #{gin_forward.1} parent=1 // loop_header
      %s17 = sphi 0, %s21
      %p18 = scmp.ge.s32.totalorder %s17, 4
      %s27 = sphi 0, %s29
      %s30 = sphi 0, %s27
      %s31 = sphi 0, %s30
      %s47 = sphi 0, %s31
      %s53 = sphi 0, %s55
      %s56 = sphi 0, %s53
      %s57 = sphi 0, %s56
      %s73 = sphi 0, %s57
      %s77 = sphi 0, %s77
      %s79 = sphi 0, %s77
      %s80 = sphi 0, %s79
      %s94 = sphi 0, %s80
      %s98 = sphi 0, %s98
      %s100 = sphi 0, %s98
      %s101 = sphi 0, %s100
      %s115 = sphi 0, %s101
      %s119 = sphi 0, %s119
      %s121 = sphi 0, %s119
      %s122 = sphi 0, %s121
      %s136 = sphi 0, %s122
      %s140 = sphi 0, %s140
      %s142 = sphi 0, %s140
      %s143 = sphi 0, %s142
      %s157 = sphi 0, %s143
      %s163 = sphi 0, %s165
      %s166 = sphi 0, %s163
      %s167 = sphi 0, %s166
      %s183 = sphi 0, %s167
    $region4: #{gin_forward.1} parent=1 // loop_header_branch
      %20 = sbr.rel (%p18) target = $region8
    $region5: #{gin_forward.1} parent=1 // loop_body
      %s22 = ssub.s32 %s17, 1
      %s23 = ssub.s32 %s17, 2
      %s24 = sadd.s32 %s17, 1
      %s25 = ssub.s32 %s17, %s24
      %p26 = scmp.eq.s32.totalorder %s25, 0
      %s28 = sadd.s32 %s27, 1
      %s29 = scalar_select %p26, %s27, %s28
      %p32 = pneg %p26
      %p33 = scmp.eq.s32.totalorder %s17, 1
      %p34 = por %p32, %p33
      %p35 = scmp.ne.s32.totalorder %s27, %s30
      %p36 = scmp.eq.s32.totalorder %s17, 0
      %p37 = por %p35, %p36
      %p38 = scmp.ne.s32.totalorder %s27, %s30
      %p39 = scmp.eq.s32.totalorder %s22, 1
      %p40 = por %p38, %p39
      %p41 = scmp.ne.s32.totalorder %s30, %s31
      %p42 = scmp.eq.s32.totalorder %s22, 0
      %p43 = por %p41, %p42
      %p44 = scmp.ne.s32.totalorder %s30, %s31
      %p45 = scmp.eq.s32.totalorder %s23, 1
      %p46 = por %p44, %p45
      %p48 = scmp.ne.s32.totalorder %s31, %s47
      %p49 = scmp.eq.s32.totalorder %s23, 0
      %p50 = por %p48, %p49
      %s51 = ssub.s32 %s17, %s24
      %p52 = scmp.eq.s32.totalorder %s51, 0
      %s54 = sadd.s32 %s53, 1
      %s55 = scalar_select %p52, %s53, %s54
      %p58 = pneg %p52
      %p59 = scmp.eq.s32.totalorder %s17, 1
      %p60 = por %p58, %p59
      %p61 = scmp.ne.s32.totalorder %s53, %s56
      %p62 = scmp.eq.s32.totalorder %s17, 0
      %p63 = por %p61, %p62
      %p64 = scmp.ne.s32.totalorder %s53, %s56
      %p65 = scmp.eq.s32.totalorder %s22, 1
      %p66 = por %p64, %p65
      %p67 = scmp.ne.s32.totalorder %s56, %s57
      %p68 = scmp.eq.s32.totalorder %s22, 0
      %p69 = por %p67, %p68
      %p70 = scmp.ne.s32.totalorder %s56, %s57
      %p71 = scmp.eq.s32.totalorder %s23, 1
      %p72 = por %p70, %p71
      %p74 = scmp.ne.s32.totalorder %s57, %s73
      %p75 = scmp.eq.s32.totalorder %s23, 0
      %p76 = por %p74, %p75
      %s78 = sadd.s32 %s77, 1
      %p81 = scmp.eq.s32.totalorder %s17, 1
      %p82 = scmp.ne.s32.totalorder %s77, %s79
      %p83 = scmp.eq.s32.totalorder %s17, 0
      %p84 = por %p82, %p83
      %p85 = scmp.ne.s32.totalorder %s77, %s79
      %p86 = scmp.eq.s32.totalorder %s22, 1
      %p87 = por %p85, %p86
      %p88 = scmp.ne.s32.totalorder %s79, %s80
      %p89 = scmp.eq.s32.totalorder %s22, 0
      %p90 = por %p88, %p89
      %p91 = scmp.ne.s32.totalorder %s79, %s80
      %p92 = scmp.eq.s32.totalorder %s23, 1
      %p93 = por %p91, %p92
      %p95 = scmp.ne.s32.totalorder %s80, %s94
      %p96 = scmp.eq.s32.totalorder %s23, 0
      %p97 = por %p95, %p96
      %s99 = sadd.s32 %s98, 1
      %p102 = scmp.eq.s32.totalorder %s17, 1
      %p103 = scmp.ne.s32.totalorder %s98, %s100
      %p104 = scmp.eq.s32.totalorder %s17, 0
      %p105 = por %p103, %p104
      %p106 = scmp.ne.s32.totalorder %s98, %s100
      %p107 = scmp.eq.s32.totalorder %s22, 1
      %p108 = por %p106, %p107
      %p109 = scmp.ne.s32.totalorder %s100, %s101
      %p110 = scmp.eq.s32.totalorder %s22, 0
      %p111 = por %p109, %p110
      %p112 = scmp.ne.s32.totalorder %s100, %s101
      %p113 = scmp.eq.s32.totalorder %s23, 1
      %p114 = por %p112, %p113
      %p116 = scmp.ne.s32.totalorder %s101, %s115
      %p117 = scmp.eq.s32.totalorder %s23, 0
      %p118 = por %p116, %p117
      %s120 = sadd.s32 %s119, 1
      %p123 = scmp.eq.s32.totalorder %s17, 1
      %p124 = scmp.ne.s32.totalorder %s119, %s121
      %p125 = scmp.eq.s32.totalorder %s17, 0
      %p126 = por %p124, %p125
      %p127 = scmp.ne.s32.totalorder %s119, %s121
      %p128 = scmp.eq.s32.totalorder %s22, 1
      %p129 = por %p127, %p128
      %p130 = scmp.ne.s32.totalorder %s121, %s122
      %p131 = scmp.eq.s32.totalorder %s22, 0
      %p132 = por %p130, %p131
      %p133 = scmp.ne.s32.totalorder %s121, %s122
      %p134 = scmp.eq.s32.totalorder %s23, 1
      %p135 = por %p133, %p134
      %p137 = scmp.ne.s32.totalorder %s122, %s136
      %p138 = scmp.eq.s32.totalorder %s23, 0
      %p139 = por %p137, %p138
      %s141 = sadd.s32 %s140, 1
      %p144 = scmp.eq.s32.totalorder %s17, 1
      %p145 = scmp.ne.s32.totalorder %s140, %s142
      %p146 = scmp.eq.s32.totalorder %s17, 0
      %p147 = por %p145, %p146
      %p148 = scmp.ne.s32.totalorder %s140, %s142
      %p149 = scmp.eq.s32.totalorder %s22, 1
      %p150 = por %p148, %p149
      %p151 = scmp.ne.s32.totalorder %s142, %s143
      %p152 = scmp.eq.s32.totalorder %s22, 0
      %p153 = por %p151, %p152
      %p154 = scmp.ne.s32.totalorder %s142, %s143
      %p155 = scmp.eq.s32.totalorder %s23, 1
      %p156 = por %p154, %p155
      %p158 = scmp.ne.s32.totalorder %s143, %s157
      %p159 = scmp.eq.s32.totalorder %s23, 0
      %p160 = por %p158, %p159
      %s161 = ssub.s32 %s17, %s24
      %p162 = scmp.eq.s32.totalorder %s161, 0
      %s164 = sadd.s32 %s163, 1
      %s165 = scalar_select %p162, %s163, %s164
      %p168 = pneg %p162
      %p169 = scmp.eq.s32.totalorder %s17, 1
      %p170 = por %p168, %p169
      %p171 = scmp.ne.s32.totalorder %s163, %s166
      %p172 = scmp.eq.s32.totalorder %s17, 0
      %p173 = por %p171, %p172
      %p174 = scmp.ne.s32.totalorder %s163, %s166
      %p175 = scmp.eq.s32.totalorder %s22, 1
      %p176 = por %p174, %p175
      %p177 = scmp.ne.s32.totalorder %s166, %s167
      %p178 = scmp.eq.s32.totalorder %s22, 0
      %p179 = por %p177, %p178
      %p180 = scmp.ne.s32.totalorder %s166, %s167
      %p181 = scmp.eq.s32.totalorder %s23, 1
      %p182 = por %p180, %p181
      %p184 = scmp.ne.s32.totalorder %s167, %s183
      %p185 = scmp.eq.s32.totalorder %s23, 0
      %p186 = por %p184, %p185
      %p187 = scmp.le.s32.totalorder 1, %s17
      %p188 = scmp.lt.s32.totalorder %s17, 3
      %p189 = pnand %p187, %p188
      %p190 = pneg %p189
      // Predicated region
      $region9: #{gin_forward.1} parent=5 // pred_check
        _
      $region10: #{gin_forward.1} parent=5 // pred_check_branch
        %192 = sbr.rel (%p189) target = $region12
      $region11: #{gin_forward.1} parent=5 // pred_region
        %s193 = ssub.s32 %s17, 1
        // Predicated region
        $region13: #{gin_forward.1} parent=11 // pred_check
          %p194 = pneg %p90
        $region14: #{gin_forward.1} parent=11 // pred_check_branch
          %196 = sbr.rel (%p194) target = $region16
        $region15: #{gin_forward.1} parent=11 // pred_region
          _
        $region16: #{gin_forward.1} parent=11 // pred_fallthru
          _
        // Predicated region
        $region17: #{gin_forward.1} parent=11 // pred_check
          %p197 = pneg %p111
        $region18: #{gin_forward.1} parent=11 // pred_check_branch
          %199 = sbr.rel (%p197) target = $region20
        $region19: #{gin_forward.1} parent=11 // pred_region
          %201 = vsyncadd [#allocation3], 0
          %s202 = sshll.u32 %s3, 4
          %s203 = int_to_ptr.hbm [resolvable:$true] %s202
          %s204 = sshll.u32 [#allocation2], 4
          %s205 = int_to_ptr.vmem [resolvable:$true] %s204
          %210 = dma.hbm_to_vmem [thread:$0]  %s203, 32, %s205, [#allocation3], 16, 16, 1
        $region20: #{gin_forward.1} parent=11 // pred_fallthru
          _
        // Predicated region
        $region21: #{gin_forward.1} parent=11 // pred_check
          %p211 = pneg %p132
        $region22: #{gin_forward.1} parent=11 // pred_check_branch
          %213 = sbr.rel (%p211) target = $region24
        $region23: #{gin_forward.1} parent=11 // pred_region
          _
        $region24: #{gin_forward.1} parent=11 // pred_fallthru
          _
        // Predicated region
        $region25: #{gin_forward.1} parent=11 // pred_check
          %p214 = pneg %p153
        $region26: #{gin_forward.1} parent=11 // pred_check_branch
          %216 = sbr.rel (%p214) target = $region28
        $region27: #{gin_forward.1} parent=11 // pred_region
          %218 = vsyncadd [#allocation6], 0
          %s219 = sshll.u32 %s5, 4
          %s220 = int_to_ptr.hbm [resolvable:$true] %s219
          %s221 = sshll.u32 [#allocation5], 4
          %s222 = int_to_ptr.vmem [resolvable:$true] %s221
          %227 = dma.hbm_to_vmem [thread:$0]  %s220, 32, %s222, [#allocation6], 16, 16, 1
        $region28: #{gin_forward.1} parent=11 // pred_fallthru
          _
      $region12: #{gin_forward.1} parent=5 // pred_fallthru
        _
      %p228 = scmp.lt.s32.totalorder %s17, 2
      // Predicated region
      $region29: #{gin_forward.1} parent=5 // pred_check
        %p229 = pneg %p228
      $region30: #{gin_forward.1} parent=5 // pred_check_branch
        %231 = sbr.rel (%p229) target = $region32
      $region31: #{gin_forward.1} parent=5 // pred_region
        // Predicated region
        $region33: #{gin_forward.1} parent=31 // pred_check
          %p232 = pneg %p37
        $region34: #{gin_forward.1} parent=31 // pred_check_branch
          %234 = sbr.rel (%p232) target = $region36
        $region35: #{gin_forward.1} parent=31 // pred_region
          %p235 = scmp.lt.s32.totalorder %s17, 1
          %s236 = scalar_select %p235, %s17, 1
          %s237 = smul.addr %s236, 16
          %s238 = smul.addr %s237, 8
          %s239 = scalar_lea.vmem %s0, %s238
        $region36: #{gin_forward.1} parent=31 // pred_fallthru
          _
        // Predicated region
        $region37: #{gin_forward.1} parent=31 // pred_check
          %p240 = pneg %p63
        $region38: #{gin_forward.1} parent=31 // pred_check_branch
          %242 = sbr.rel (%p240) target = $region40
        $region39: #{gin_forward.1} parent=31 // pred_region
          %p243 = scmp.lt.s32.totalorder %s17, 1
          %s244 = scalar_select %p243, %s17, 1
          %s245 = smul.addr %s244, 16
          %s246 = smul.addr %s245, 8
          %s247 = scalar_lea.vmem %s1, %s246
        $region40: #{gin_forward.1} parent=31 // pred_fallthru
          _
      $region32: #{gin_forward.1} parent=5 // pred_fallthru
        _
      %p248 = scmp.le.s32.totalorder 1, %s17
      %p249 = scmp.lt.s32.totalorder %s17, 3
      %p250 = pnand %p248, %p249
      %p251 = pneg %p250
      // Predicated region
      $region41: #{gin_forward.1} parent=5 // pred_check
        _
      $region42: #{gin_forward.1} parent=5 // pred_check_branch
        %253 = sbr.rel (%p250) target = $region44
      $region43: #{gin_forward.1} parent=5 // pred_region
        %s254 = ssub.s32 %s17, 1
        // Predicated region
        $region45: #{gin_forward.1} parent=43 // pred_check
          %p255 = pneg %p111
        $region46: #{gin_forward.1} parent=43 // pred_check_branch
          %257 = sbr.rel (%p255) target = $region48
        $region47: #{gin_forward.1} parent=43 // pred_region
          %259 = dma.done [#allocation3], 32
        $region48: #{gin_forward.1} parent=43 // pred_fallthru
          _
        // Predicated region
        $region49: #{gin_forward.1} parent=43 // pred_check
          %p260 = pneg %p153
        $region50: #{gin_forward.1} parent=43 // pred_check_branch
          %262 = sbr.rel (%p260) target = $region52
        $region51: #{gin_forward.1} parent=43 // pred_region
          %264 = dma.done [#allocation6], 32
        $region52: #{gin_forward.1} parent=43 // pred_fallthru
          _
        %p265 = scmp.lt.s32.totalorder %s22, 1
        %s266 = scalar_select %p265, %s22, 1
        %s267 = smul.addr %s266, 16
        %s268 = smul.addr %s267, 8
        %s269 = scalar_lea.vmem %s0, %s268
        %p270 = pneg %p43
        %p271 = pneg %p40
        %p272 = scmp.lt.s32.totalorder %s22, 1
        %s273 = scalar_select %p272, %s22, 1
        %s274 = smul.addr %s273, 16
        %s275 = smul.addr %s274, 8
        %s276 = scalar_lea.vmem %s1, %s275
        %p277 = pneg %p69
        %p278 = pneg %p66
        %p279 = pneg %p90
        %p280 = pneg %p87
        %p281 = pneg %p111
        %p282 = pneg %p108
        %p283 = pneg %p132
        %p284 = pneg %p129
        %p285 = pneg %p153
        %p286 = pneg %p150
        %p287 = pneg %p179
        %p288 = pneg %p176
        %s289 = sand.u32 %s166, 1
        %s290 = scalar_lea.sflag [#allocation4], %s289
        %s291 = sand.u32 %s166, 1
        %s292 = smul.addr %s291, 128
        %s293 = scalar_lea.vmem [#allocation7], %s292
        %p294 = scmp.lt.s32.totalorder %s22, 1
        %s295 = scalar_select %p294, %s22, 1
        %s296 = smul.addr %s295, 16
        %s297 = smul.addr %s296, 8
        %s298 = scalar_lea.vmem %s0, %s297
        %p299 = scmp.lt.s32.totalorder %s22, 1
        %s300 = scalar_select %p299, %s22, 1
        %s301 = smul.addr %s300, 16
        %s302 = smul.addr %s301, 8
        %s303 = scalar_lea.vmem %s1, %s302
        %v304 = vld [vmem:[%s298] sm:$0xff]
        %v305 = vld [vmem:[%s298 + $0x8] sm:$0xff]
        %v306 = vld [vmem:[%s298 + $0x10] sm:$0xff]
        %v307 = vld [vmem:[%s298 + $0x18] sm:$0xff]
        %v308 = vld [vmem:[%s298 + $0x20] sm:$0xff]
        %v309 = vld [vmem:[%s298 + $0x28] sm:$0xff]
        %v310 = vld [vmem:[%s298 + $0x30] sm:$0xff]
        %v311 = vld [vmem:[%s298 + $0x38] sm:$0xff]
        %v312 = vld [vmem:[%s298 + $0x40] sm:$0xff]
        %v313 = vld [vmem:[%s298 + $0x48] sm:$0xff]
        %v314 = vld [vmem:[%s298 + $0x50] sm:$0xff]
        %v315 = vld [vmem:[%s298 + $0x58] sm:$0xff]
        %v316 = vld [vmem:[%s298 + $0x60] sm:$0xff]
        %v317 = vld [vmem:[%s298 + $0x68] sm:$0xff]
        %v318 = vld [vmem:[%s298 + $0x70] sm:$0xff]
        %v319 = vld [vmem:[%s298 + $0x78] sm:$0xff]
        %v320 = vld [vmem:[%s303] sm:$0xff]
        %v321 = vld [vmem:[%s303 + $0x8] sm:$0xff]
        %v322 = vld [vmem:[%s303 + $0x10] sm:$0xff]
        %v323 = vld [vmem:[%s303 + $0x18] sm:$0xff]
        %v324 = vld [vmem:[%s303 + $0x20] sm:$0xff]
        %v325 = vld [vmem:[%s303 + $0x28] sm:$0xff]
        %v326 = vld [vmem:[%s303 + $0x30] sm:$0xff]
        %v327 = vld [vmem:[%s303 + $0x38] sm:$0xff]
        %v328 = vld [vmem:[%s303 + $0x40] sm:$0xff]
        %v329 = vld [vmem:[%s303 + $0x48] sm:$0xff]
        %v330 = vld [vmem:[%s303 + $0x50] sm:$0xff]
        %v331 = vld [vmem:[%s303 + $0x58] sm:$0xff]
        %v332 = vld [vmem:[%s303 + $0x60] sm:$0xff]
        %v333 = vld [vmem:[%s303 + $0x68] sm:$0xff]
        %v334 = vld [vmem:[%s303 + $0x70] sm:$0xff]
        %v335 = vld [vmem:[%s303 + $0x78] sm:$0xff]
        %336 = vmatpush.msra.mxu0 %v335
        %337 = vmatpush.msra.mxu0 %v334
        %338 = vmatpush.msra.mxu0 %v333
        %339 = vmatpush.msra.mxu0 %v332
        %340 = vmatpush.msra.mxu0 %v331
        %341 = vmatpush.msra.mxu0 %v330
        %342 = vmatpush.msra.mxu0 %v329
        %343 = vmatpush.msra.mxu0 %v328
        %344 = vmatpush.msra.mxu0 %v327
        %345 = vmatpush.msra.mxu0 %v326
        %346 = vmatpush.msra.mxu0 %v325
        %347 = vmatpush.msra.mxu0 %v324
        %348 = vmatpush.msra.mxu0 %v323
        %349 = vmatpush.msra.mxu0 %v322
        %350 = vmatpush.msra.mxu0 %v321
        %351 = vmatpush.msra.mxu0 %v320
        %352 = vmatmul.f32.gmra.mxu0 %v304
        %v353 = vpop.f32.mrf.mxu0
        %v354 = vadd.f32 0.0, %v353
        %355 = vmatmul.f32.gmra.mxu0 %v305
        %v356 = vpop.f32.mrf.mxu0
        %v357 = vadd.f32 0.0, %v356
        %358 = vmatmul.f32.gmra.mxu0 %v306
        %v359 = vpop.f32.mrf.mxu0
        %v360 = vadd.f32 0.0, %v359
        %361 = vmatmul.f32.gmra.mxu0 %v307
        %v362 = vpop.f32.mrf.mxu0
        %v363 = vadd.f32 0.0, %v362
        %364 = vmatmul.f32.gmra.mxu0 %v308
        %v365 = vpop.f32.mrf.mxu0
        %v366 = vadd.f32 0.0, %v365
        %367 = vmatmul.f32.gmra.mxu0 %v309
        %v368 = vpop.f32.mrf.mxu0
        %v369 = vadd.f32 0.0, %v368
        %370 = vmatmul.f32.gmra.mxu0 %v310
        %v371 = vpop.f32.mrf.mxu0
        %v372 = vadd.f32 0.0, %v371
        %373 = vmatmul.f32.gmra.mxu0 %v311
        %v374 = vpop.f32.mrf.mxu0
        %v375 = vadd.f32 0.0, %v374
        %376 = vmatmul.f32.gmra.mxu0 %v312
        %v377 = vpop.f32.mrf.mxu0
        %v378 = vadd.f32 0.0, %v377
        %379 = vmatmul.f32.gmra.mxu0 %v313
        %v380 = vpop.f32.mrf.mxu0
        %v381 = vadd.f32 0.0, %v380
        %382 = vmatmul.f32.gmra.mxu0 %v314
        %v383 = vpop.f32.mrf.mxu0
        %v384 = vadd.f32 0.0, %v383
        %385 = vmatmul.f32.gmra.mxu0 %v315
        %v386 = vpop.f32.mrf.mxu0
        %v387 = vadd.f32 0.0, %v386
        %388 = vmatmul.f32.gmra.mxu0 %v316
        %v389 = vpop.f32.mrf.mxu0
        %v390 = vadd.f32 0.0, %v389
        %391 = vmatmul.f32.gmra.mxu0 %v317
        %v392 = vpop.f32.mrf.mxu0
        %v393 = vadd.f32 0.0, %v392
        %394 = vmatmul.f32.gmra.mxu0 %v318
        %v395 = vpop.f32.mrf.mxu0
        %v396 = vadd.f32 0.0, %v395
        %397 = vmatmul.f32.gmra.mxu0 %v319
        %v398 = vpop.f32.mrf.mxu0
        %v399 = vadd.f32 0.0, %v398
        %400 = vdwg.mxu0
        %v401 = vld [vmem:[%s2] sm:$0xff]
        %v402 = vld [vmem:[%s2 + $0x8] sm:$0xff]
        %v403 = vld [vmem:[%s2 + $0x10] sm:$0xff]
        %v404 = vld [vmem:[%s2 + $0x18] sm:$0xff]
        %v405 = vld [vmem:[%s2 + $0x20] sm:$0xff]
        %v406 = vld [vmem:[%s2 + $0x28] sm:$0xff]
        %v407 = vld [vmem:[%s2 + $0x30] sm:$0xff]
        %v408 = vld [vmem:[%s2 + $0x38] sm:$0xff]
        %v409 = vld [vmem:[%s2 + $0x40] sm:$0xff]
        %v410 = vld [vmem:[%s2 + $0x48] sm:$0xff]
        %v411 = vld [vmem:[%s2 + $0x50] sm:$0xff]
        %v412 = vld [vmem:[%s2 + $0x58] sm:$0xff]
        %v413 = vld [vmem:[%s2 + $0x60] sm:$0xff]
        %v414 = vld [vmem:[%s2 + $0x68] sm:$0xff]
        %v415 = vld [vmem:[%s2 + $0x70] sm:$0xff]
        %v416 = vld [vmem:[%s2 + $0x78] sm:$0xff]
        %v417 = vld [vmem:[#allocation2] sm:$0x1]
        %v419 = vperm.slane %v417, 0
        %421 = vmatpush.msra.mxu0 %v416
        %422 = vmatpush.msra.mxu0 %v415
        %423 = vmatpush.msra.mxu0 %v414
        %424 = vmatpush.msra.mxu0 %v413
        %425 = vmatpush.msra.mxu0 %v412
        %426 = vmatpush.msra.mxu0 %v411
        %427 = vmatpush.msra.mxu0 %v410
        %428 = vmatpush.msra.mxu0 %v409
        %429 = vmatpush.msra.mxu0 %v408
        %430 = vmatpush.msra.mxu0 %v407
        %431 = vmatpush.msra.mxu0 %v406
        %432 = vmatpush.msra.mxu0 %v405
        %433 = vmatpush.msra.mxu0 %v404
        %434 = vmatpush.msra.mxu0 %v403
        %435 = vmatpush.msra.mxu0 %v402
        %436 = vmatpush.msra.mxu0 %v401
        %437 = vmatmul.f32.gmra.mxu0 %v354
        %v438 = vpop.f32.mrf.mxu0
        %v439 = vadd.f32 %v419, %v438
        %440 = vmatmul.f32.gmra.mxu0 %v357
        %v441 = vpop.f32.mrf.mxu0
        %v442 = vadd.f32 %v419, %v441
        %443 = vmatmul.f32.gmra.mxu0 %v360
        %v444 = vpop.f32.mrf.mxu0
        %v445 = vadd.f32 %v419, %v444
        %446 = vmatmul.f32.gmra.mxu0 %v363
        %v447 = vpop.f32.mrf.mxu0
        %v448 = vadd.f32 %v419, %v447
        %449 = vmatmul.f32.gmra.mxu0 %v366
        %v450 = vpop.f32.mrf.mxu0
        %v451 = vadd.f32 %v419, %v450
        %452 = vmatmul.f32.gmra.mxu0 %v369
        %v453 = vpop.f32.mrf.mxu0
        %v454 = vadd.f32 %v419, %v453
        %455 = vmatmul.f32.gmra.mxu0 %v372
        %v456 = vpop.f32.mrf.mxu0
        %v457 = vadd.f32 %v419, %v456
        %458 = vmatmul.f32.gmra.mxu0 %v375
        %v459 = vpop.f32.mrf.mxu0
        %v460 = vadd.f32 %v419, %v459
        %461 = vmatmul.f32.gmra.mxu0 %v378
        %v462 = vpop.f32.mrf.mxu0
        %v463 = vadd.f32 %v419, %v462
        %464 = vmatmul.f32.gmra.mxu0 %v381
        %v465 = vpop.f32.mrf.mxu0
        %v466 = vadd.f32 %v419, %v465
        %467 = vmatmul.f32.gmra.mxu0 %v384
        %v468 = vpop.f32.mrf.mxu0
        %v469 = vadd.f32 %v419, %v468
        %470 = vmatmul.f32.gmra.mxu0 %v387
        %v471 = vpop.f32.mrf.mxu0
        %v472 = vadd.f32 %v419, %v471
        %473 = vmatmul.f32.gmra.mxu0 %v390
        %v474 = vpop.f32.mrf.mxu0
        %v475 = vadd.f32 %v419, %v474
        %476 = vmatmul.f32.gmra.mxu0 %v393
        %v477 = vpop.f32.mrf.mxu0
        %v478 = vadd.f32 %v419, %v477
        %479 = vmatmul.f32.gmra.mxu0 %v396
        %v480 = vpop.f32.mrf.mxu0
        %v481 = vadd.f32 %v419, %v480
        %482 = vmatmul.f32.gmra.mxu0 %v399
        %v483 = vpop.f32.mrf.mxu0
        %v484 = vadd.f32 %v419, %v483
        %485 = vdwg.mxu0
        %v486 = vmax.f32 %v439, 0.0
        %v487 = vmax.f32 %v442, 0.0
        %v488 = vmax.f32 %v445, 0.0
        %v489 = vmax.f32 %v448, 0.0
        %v490 = vmax.f32 %v451, 0.0
        %v491 = vmax.f32 %v454, 0.0
        %v492 = vmax.f32 %v457, 0.0
        %v493 = vmax.f32 %v460, 0.0
        %v494 = vmax.f32 %v463, 0.0
        %v495 = vmax.f32 %v466, 0.0
        %v496 = vmax.f32 %v469, 0.0
        %v497 = vmax.f32 %v472, 0.0
        %v498 = vmax.f32 %v475, 0.0
        %v499 = vmax.f32 %v478, 0.0
        %v500 = vmax.f32 %v481, 0.0
        %v501 = vmax.f32 %v484, 0.0
        %v502 = vld [vmem:[%s4] sm:$0xff]
        %v503 = vld [vmem:[%s4 + $0x8] sm:$0xff]
        %v504 = vld [vmem:[%s4 + $0x10] sm:$0xff]
        %v505 = vld [vmem:[%s4 + $0x18] sm:$0xff]
        %v506 = vld [vmem:[%s4 + $0x20] sm:$0xff]
        %v507 = vld [vmem:[%s4 + $0x28] sm:$0xff]
        %v508 = vld [vmem:[%s4 + $0x30] sm:$0xff]
        %v509 = vld [vmem:[%s4 + $0x38] sm:$0xff]
        %v510 = vld [vmem:[%s4 + $0x40] sm:$0xff]
        %v511 = vld [vmem:[%s4 + $0x48] sm:$0xff]
        %v512 = vld [vmem:[%s4 + $0x50] sm:$0xff]
        %v513 = vld [vmem:[%s4 + $0x58] sm:$0xff]
        %v514 = vld [vmem:[%s4 + $0x60] sm:$0xff]
        %v515 = vld [vmem:[%s4 + $0x68] sm:$0xff]
        %v516 = vld [vmem:[%s4 + $0x70] sm:$0xff]
        %v517 = vld [vmem:[%s4 + $0x78] sm:$0xff]
        %v518 = vld [vmem:[#allocation5] sm:$0x1]
        %v520 = vperm.slane %v518, 0
        %522 = vmatpush.msra.mxu0 %v517
        %523 = vmatpush.msra.mxu0 %v516
        %524 = vmatpush.msra.mxu0 %v515
        %525 = vmatpush.msra.mxu0 %v514
        %526 = vmatpush.msra.mxu0 %v513
        %527 = vmatpush.msra.mxu0 %v512
        %528 = vmatpush.msra.mxu0 %v511
        %529 = vmatpush.msra.mxu0 %v510
        %530 = vmatpush.msra.mxu0 %v509
        %531 = vmatpush.msra.mxu0 %v508
        %532 = vmatpush.msra.mxu0 %v507
        %533 = vmatpush.msra.mxu0 %v506
        %534 = vmatpush.msra.mxu0 %v505
        %535 = vmatpush.msra.mxu0 %v504
        %536 = vmatpush.msra.mxu0 %v503
        %537 = vmatpush.msra.mxu0 %v502
        %538 = vmatmul.f32.gmra.mxu0 %v486
        %v539 = vpop.f32.mrf.mxu0
        %v540 = vadd.f32 %v520, %v539
        %541 = vmatmul.f32.gmra.mxu0 %v487
        %v542 = vpop.f32.mrf.mxu0
        %v543 = vadd.f32 %v520, %v542
        %544 = vmatmul.f32.gmra.mxu0 %v488
        %v545 = vpop.f32.mrf.mxu0
        %v546 = vadd.f32 %v520, %v545
        %547 = vmatmul.f32.gmra.mxu0 %v489
        %v548 = vpop.f32.mrf.mxu0
        %v549 = vadd.f32 %v520, %v548
        %550 = vmatmul.f32.gmra.mxu0 %v490
        %v551 = vpop.f32.mrf.mxu0
        %v552 = vadd.f32 %v520, %v551
        %553 = vmatmul.f32.gmra.mxu0 %v491
        %v554 = vpop.f32.mrf.mxu0
        %v555 = vadd.f32 %v520, %v554
        %556 = vmatmul.f32.gmra.mxu0 %v492
        %v557 = vpop.f32.mrf.mxu0
        %v558 = vadd.f32 %v520, %v557
        %559 = vmatmul.f32.gmra.mxu0 %v493
        %v560 = vpop.f32.mrf.mxu0
        %v561 = vadd.f32 %v520, %v560
        %562 = vmatmul.f32.gmra.mxu0 %v494
        %v563 = vpop.f32.mrf.mxu0
        %v564 = vadd.f32 %v520, %v563
        %565 = vmatmul.f32.gmra.mxu0 %v495
        %v566 = vpop.f32.mrf.mxu0
        %v567 = vadd.f32 %v520, %v566
        %568 = vmatmul.f32.gmra.mxu0 %v496
        %v569 = vpop.f32.mrf.mxu0
        %v570 = vadd.f32 %v520, %v569
        %571 = vmatmul.f32.gmra.mxu0 %v497
        %v572 = vpop.f32.mrf.mxu0
        %v573 = vadd.f32 %v520, %v572
        %574 = vmatmul.f32.gmra.mxu0 %v498
        %v575 = vpop.f32.mrf.mxu0
        %v576 = vadd.f32 %v520, %v575
        %577 = vmatmul.f32.gmra.mxu0 %v499
        %v578 = vpop.f32.mrf.mxu0
        %v579 = vadd.f32 %v520, %v578
        %580 = vmatmul.f32.gmra.mxu0 %v500
        %v581 = vpop.f32.mrf.mxu0
        %v582 = vadd.f32 %v520, %v581
        %583 = vmatmul.f32.gmra.mxu0 %v501
        %v584 = vpop.f32.mrf.mxu0
        %v585 = vadd.f32 %v520, %v584
        %586 = vdwg.mxu0
        %v587 = vmax.f32 %v540, 0.0
        %v588 = vmax.f32 %v543, 0.0
        %v589 = vmax.f32 %v546, 0.0
        %v590 = vmax.f32 %v549, 0.0
        %v591 = vmax.f32 %v552, 0.0
        %v592 = vmax.f32 %v555, 0.0
        %v593 = vmax.f32 %v558, 0.0
        %v594 = vmax.f32 %v561, 0.0
        %v595 = vmax.f32 %v564, 0.0
        %v596 = vmax.f32 %v567, 0.0
        %v597 = vmax.f32 %v570, 0.0
        %v598 = vmax.f32 %v573, 0.0
        %v599 = vmax.f32 %v576, 0.0
        %v600 = vmax.f32 %v579, 0.0
        %v601 = vmax.f32 %v582, 0.0
        %v602 = vmax.f32 %v585, 0.0
        %603 = vmatpush.msra.mxu0 %v602
        %604 = vmatpush.msra.mxu0 %v601
        %605 = vmatpush.msra.mxu0 %v600
        %606 = vmatpush.msra.mxu0 %v599
        %607 = vmatpush.msra.mxu0 %v598
        %608 = vmatpush.msra.mxu0 %v597
        %609 = vmatpush.msra.mxu0 %v596
        %610 = vmatpush.msra.mxu0 %v595
        %611 = vmatpush.msra.mxu0 %v594
        %612 = vmatpush.msra.mxu0 %v593
        %613 = vmatpush.msra.mxu0 %v592
        %614 = vmatpush.msra.mxu0 %v591
        %615 = vmatpush.msra.mxu0 %v590
        %616 = vmatpush.msra.mxu0 %v589
        %617 = vmatpush.msra.mxu0 %v588
        %618 = vmatpush.msra.mxu0 %v587
        %619 = vmatmul.f32.gmra.mxu0 %v304
        %v620 = vpop.f32.mrf.mxu0
        %v621 = vadd.f32 0.0, %v620
        %622 = vmatmul.f32.gmra.mxu0 %v305
        %v623 = vpop.f32.mrf.mxu0
        %v624 = vadd.f32 0.0, %v623
        %625 = vmatmul.f32.gmra.mxu0 %v306
        %v626 = vpop.f32.mrf.mxu0
        %v627 = vadd.f32 0.0, %v626
        %628 = vmatmul.f32.gmra.mxu0 %v307
        %v629 = vpop.f32.mrf.mxu0
        %v630 = vadd.f32 0.0, %v629
        %631 = vmatmul.f32.gmra.mxu0 %v308
        %v632 = vpop.f32.mrf.mxu0
        %v633 = vadd.f32 0.0, %v632
        %634 = vmatmul.f32.gmra.mxu0 %v309
        %v635 = vpop.f32.mrf.mxu0
        %v636 = vadd.f32 0.0, %v635
        %637 = vmatmul.f32.gmra.mxu0 %v310
        %v638 = vpop.f32.mrf.mxu0
        %v639 = vadd.f32 0.0, %v638
        %640 = vmatmul.f32.gmra.mxu0 %v311
        %v641 = vpop.f32.mrf.mxu0
        %v642 = vadd.f32 0.0, %v641
        %643 = vmatmul.f32.gmra.mxu0 %v312
        %v644 = vpop.f32.mrf.mxu0
        %v645 = vadd.f32 0.0, %v644
        %646 = vmatmul.f32.gmra.mxu0 %v313
        %v647 = vpop.f32.mrf.mxu0
        %v648 = vadd.f32 0.0, %v647
        %649 = vmatmul.f32.gmra.mxu0 %v314
        %v650 = vpop.f32.mrf.mxu0
        %v651 = vadd.f32 0.0, %v650
        %652 = vmatmul.f32.gmra.mxu0 %v315
        %v653 = vpop.f32.mrf.mxu0
        %v654 = vadd.f32 0.0, %v653
        %655 = vmatmul.f32.gmra.mxu0 %v316
        %v656 = vpop.f32.mrf.mxu0
        %v657 = vadd.f32 0.0, %v656
        %658 = vmatmul.f32.gmra.mxu0 %v317
        %v659 = vpop.f32.mrf.mxu0
        %v660 = vadd.f32 0.0, %v659
        %661 = vmatmul.f32.gmra.mxu0 %v318
        %v662 = vpop.f32.mrf.mxu0
        %v663 = vadd.f32 0.0, %v662
        %664 = vmatmul.f32.gmra.mxu0 %v319
        %v665 = vpop.f32.mrf.mxu0
        %v666 = vadd.f32 0.0, %v665
        %667 = vdwg.mxu0
        %s668 = scalar_lea.vmem %s2, 128
        %v669 = vld [vmem:[%s668] sm:$0xff]
        %v670 = vld [vmem:[%s668 + $0x8] sm:$0xff]
        %v671 = vld [vmem:[%s668 + $0x10] sm:$0xff]
        %v672 = vld [vmem:[%s668 + $0x18] sm:$0xff]
        %v673 = vld [vmem:[%s668 + $0x20] sm:$0xff]
        %v674 = vld [vmem:[%s668 + $0x28] sm:$0xff]
        %v675 = vld [vmem:[%s668 + $0x30] sm:$0xff]
        %v676 = vld [vmem:[%s668 + $0x38] sm:$0xff]
        %v677 = vld [vmem:[%s668 + $0x40] sm:$0xff]
        %v678 = vld [vmem:[%s668 + $0x48] sm:$0xff]
        %v679 = vld [vmem:[%s668 + $0x50] sm:$0xff]
        %v680 = vld [vmem:[%s668 + $0x58] sm:$0xff]
        %v681 = vld [vmem:[%s668 + $0x60] sm:$0xff]
        %v682 = vld [vmem:[%s668 + $0x68] sm:$0xff]
        %v683 = vld [vmem:[%s668 + $0x70] sm:$0xff]
        %v684 = vld [vmem:[%s668 + $0x78] sm:$0xff]
        %s685 = scalar_lea.vmem [#allocation2], 1
        %v686 = vld [vmem:[%s685] sm:$0x1]
        %v688 = vperm.slane %v686, 0
        %690 = vmatpush.msra.mxu0 %v684
        %691 = vmatpush.msra.mxu0 %v683
        %692 = vmatpush.msra.mxu0 %v682
        %693 = vmatpush.msra.mxu0 %v681
        %694 = vmatpush.msra.mxu0 %v680
        %695 = vmatpush.msra.mxu0 %v679
        %696 = vmatpush.msra.mxu0 %v678
        %697 = vmatpush.msra.mxu0 %v677
        %698 = vmatpush.msra.mxu0 %v676
        %699 = vmatpush.msra.mxu0 %v675
        %700 = vmatpush.msra.mxu0 %v674
        %701 = vmatpush.msra.mxu0 %v673
        %702 = vmatpush.msra.mxu0 %v672
        %703 = vmatpush.msra.mxu0 %v671
        %704 = vmatpush.msra.mxu0 %v670
        %705 = vmatpush.msra.mxu0 %v669
        %706 = vmatmul.f32.gmra.mxu0 %v621
        %v707 = vpop.f32.mrf.mxu0
        %v708 = vadd.f32 %v688, %v707
        %709 = vmatmul.f32.gmra.mxu0 %v624
        %v710 = vpop.f32.mrf.mxu0
        %v711 = vadd.f32 %v688, %v710
        %712 = vmatmul.f32.gmra.mxu0 %v627
        %v713 = vpop.f32.mrf.mxu0
        %v714 = vadd.f32 %v688, %v713
        %715 = vmatmul.f32.gmra.mxu0 %v630
        %v716 = vpop.f32.mrf.mxu0
        %v717 = vadd.f32 %v688, %v716
        %718 = vmatmul.f32.gmra.mxu0 %v633
        %v719 = vpop.f32.mrf.mxu0
        %v720 = vadd.f32 %v688, %v719
        %721 = vmatmul.f32.gmra.mxu0 %v636
        %v722 = vpop.f32.mrf.mxu0
        %v723 = vadd.f32 %v688, %v722
        %724 = vmatmul.f32.gmra.mxu0 %v639
        %v725 = vpop.f32.mrf.mxu0
        %v726 = vadd.f32 %v688, %v725
        %727 = vmatmul.f32.gmra.mxu0 %v642
        %v728 = vpop.f32.mrf.mxu0
        %v729 = vadd.f32 %v688, %v728
        %730 = vmatmul.f32.gmra.mxu0 %v645
        %v731 = vpop.f32.mrf.mxu0
        %v732 = vadd.f32 %v688, %v731
        %733 = vmatmul.f32.gmra.mxu0 %v648
        %v734 = vpop.f32.mrf.mxu0
        %v735 = vadd.f32 %v688, %v734
        %736 = vmatmul.f32.gmra.mxu0 %v651
        %v737 = vpop.f32.mrf.mxu0
        %v738 = vadd.f32 %v688, %v737
        %739 = vmatmul.f32.gmra.mxu0 %v654
        %v740 = vpop.f32.mrf.mxu0
        %v741 = vadd.f32 %v688, %v740
        %742 = vmatmul.f32.gmra.mxu0 %v657
        %v743 = vpop.f32.mrf.mxu0
        %v744 = vadd.f32 %v688, %v743
        %745 = vmatmul.f32.gmra.mxu0 %v660
        %v746 = vpop.f32.mrf.mxu0
        %v747 = vadd.f32 %v688, %v746
        %748 = vmatmul.f32.gmra.mxu0 %v663
        %v749 = vpop.f32.mrf.mxu0
        %v750 = vadd.f32 %v688, %v749
        %751 = vmatmul.f32.gmra.mxu0 %v666
        %v752 = vpop.f32.mrf.mxu0
        %v753 = vadd.f32 %v688, %v752
        %754 = vdwg.mxu0
        %v755 = vmax.f32 %v708, 0.0
        %v756 = vmax.f32 %v711, 0.0
        %v757 = vmax.f32 %v714, 0.0
        %v758 = vmax.f32 %v717, 0.0
        %v759 = vmax.f32 %v720, 0.0
        %v760 = vmax.f32 %v723, 0.0
        %v761 = vmax.f32 %v726, 0.0
        %v762 = vmax.f32 %v729, 0.0
        %v763 = vmax.f32 %v732, 0.0
        %v764 = vmax.f32 %v735, 0.0
        %v765 = vmax.f32 %v738, 0.0
        %v766 = vmax.f32 %v741, 0.0
        %v767 = vmax.f32 %v744, 0.0
        %v768 = vmax.f32 %v747, 0.0
        %v769 = vmax.f32 %v750, 0.0
        %v770 = vmax.f32 %v753, 0.0
        %s771 = scalar_lea.vmem %s4, 128
        %v772 = vld [vmem:[%s771] sm:$0xff]
        %v773 = vld [vmem:[%s771 + $0x8] sm:$0xff]
        %v774 = vld [vmem:[%s771 + $0x10] sm:$0xff]
        %v775 = vld [vmem:[%s771 + $0x18] sm:$0xff]
        %v776 = vld [vmem:[%s771 + $0x20] sm:$0xff]
        %v777 = vld [vmem:[%s771 + $0x28] sm:$0xff]
        %v778 = vld [vmem:[%s771 + $0x30] sm:$0xff]
        %v779 = vld [vmem:[%s771 + $0x38] sm:$0xff]
        %v780 = vld [vmem:[%s771 + $0x40] sm:$0xff]
        %v781 = vld [vmem:[%s771 + $0x48] sm:$0xff]
        %v782 = vld [vmem:[%s771 + $0x50] sm:$0xff]
        %v783 = vld [vmem:[%s771 + $0x58] sm:$0xff]
        %v784 = vld [vmem:[%s771 + $0x60] sm:$0xff]
        %v785 = vld [vmem:[%s771 + $0x68] sm:$0xff]
        %v786 = vld [vmem:[%s771 + $0x70] sm:$0xff]
        %v787 = vld [vmem:[%s771 + $0x78] sm:$0xff]
        %s788 = scalar_lea.vmem [#allocation5], 1
        %v789 = vld [vmem:[%s788] sm:$0x1]
        %v791 = vperm.slane %v789, 0
        %793 = vmatpush.msra.mxu0 %v787
        %794 = vmatpush.msra.mxu0 %v786
        %795 = vmatpush.msra.mxu0 %v785
        %796 = vmatpush.msra.mxu0 %v784
        %797 = vmatpush.msra.mxu0 %v783
        %798 = vmatpush.msra.mxu0 %v782
        %799 = vmatpush.msra.mxu0 %v781
        %800 = vmatpush.msra.mxu0 %v780
        %801 = vmatpush.msra.mxu0 %v779
        %802 = vmatpush.msra.mxu0 %v778
        %803 = vmatpush.msra.mxu0 %v777
        %804 = vmatpush.msra.mxu0 %v776
        %805 = vmatpush.msra.mxu0 %v775
        %806 = vmatpush.msra.mxu0 %v774
        %807 = vmatpush.msra.mxu0 %v773
        %808 = vmatpush.msra.mxu0 %v772
        %809 = vmatmul.f32.gmra.mxu0 %v755
        %v810 = vpop.f32.mrf.mxu0
        %v811 = vadd.f32 %v791, %v810
        %812 = vmatmul.f32.gmra.mxu0 %v756
        %v813 = vpop.f32.mrf.mxu0
        %v814 = vadd.f32 %v791, %v813
        %815 = vmatmul.f32.gmra.mxu0 %v757
        %v816 = vpop.f32.mrf.mxu0
        %v817 = vadd.f32 %v791, %v816
        %818 = vmatmul.f32.gmra.mxu0 %v758
        %v819 = vpop.f32.mrf.mxu0
        %v820 = vadd.f32 %v791, %v819
        %821 = vmatmul.f32.gmra.mxu0 %v759
        %v822 = vpop.f32.mrf.mxu0
        %v823 = vadd.f32 %v791, %v822
        %824 = vmatmul.f32.gmra.mxu0 %v760
        %v825 = vpop.f32.mrf.mxu0
        %v826 = vadd.f32 %v791, %v825
        %827 = vmatmul.f32.gmra.mxu0 %v761
        %v828 = vpop.f32.mrf.mxu0
        %v829 = vadd.f32 %v791, %v828
        %830 = vmatmul.f32.gmra.mxu0 %v762
        %v831 = vpop.f32.mrf.mxu0
        %v832 = vadd.f32 %v791, %v831
        %833 = vmatmul.f32.gmra.mxu0 %v763
        %v834 = vpop.f32.mrf.mxu0
        %v835 = vadd.f32 %v791, %v834
        %836 = vmatmul.f32.gmra.mxu0 %v764
        %v837 = vpop.f32.mrf.mxu0
        %v838 = vadd.f32 %v791, %v837
        %839 = vmatmul.f32.gmra.mxu0 %v765
        %v840 = vpop.f32.mrf.mxu0
        %v841 = vadd.f32 %v791, %v840
        %842 = vmatmul.f32.gmra.mxu0 %v766
        %v843 = vpop.f32.mrf.mxu0
        %v844 = vadd.f32 %v791, %v843
        %845 = vmatmul.f32.gmra.mxu0 %v767
        %v846 = vpop.f32.mrf.mxu0
        %v847 = vadd.f32 %v791, %v846
        %848 = vmatmul.f32.gmra.mxu0 %v768
        %v849 = vpop.f32.mrf.mxu0
        %v850 = vadd.f32 %v791, %v849
        %851 = vmatmul.f32.gmra.mxu0 %v769
        %v852 = vpop.f32.mrf.mxu0
        %v853 = vadd.f32 %v791, %v852
        %854 = vmatmul.f32.gmra.mxu0 %v770
        %v855 = vpop.f32.mrf.mxu0
        %v856 = vadd.f32 %v791, %v855
        %857 = vdwg.mxu0
        %v858 = vmax.f32 %v811, 0.0
        %v859 = vmax.f32 %v814, 0.0
        %v860 = vmax.f32 %v817, 0.0
        %v861 = vmax.f32 %v820, 0.0
        %v862 = vmax.f32 %v823, 0.0
        %v863 = vmax.f32 %v826, 0.0
        %v864 = vmax.f32 %v829, 0.0
        %v865 = vmax.f32 %v832, 0.0
        %v866 = vmax.f32 %v835, 0.0
        %v867 = vmax.f32 %v838, 0.0
        %v868 = vmax.f32 %v841, 0.0
        %v869 = vmax.f32 %v844, 0.0
        %v870 = vmax.f32 %v847, 0.0
        %v871 = vmax.f32 %v850, 0.0
        %v872 = vmax.f32 %v853, 0.0
        %v873 = vmax.f32 %v856, 0.0
        %874 = vst [vmem:[%s293] sm:$0xff] %v858
        %875 = vst [vmem:[%s293 + $0x8] sm:$0xff] %v859
        %876 = vst [vmem:[%s293 + $0x10] sm:$0xff] %v860
        %877 = vst [vmem:[%s293 + $0x18] sm:$0xff] %v861
        %878 = vst [vmem:[%s293 + $0x20] sm:$0xff] %v862
        %879 = vst [vmem:[%s293 + $0x28] sm:$0xff] %v863
        %880 = vst [vmem:[%s293 + $0x30] sm:$0xff] %v864
        %881 = vst [vmem:[%s293 + $0x38] sm:$0xff] %v865
        %882 = vst [vmem:[%s293 + $0x40] sm:$0xff] %v866
        %883 = vst [vmem:[%s293 + $0x48] sm:$0xff] %v867
        %884 = vst [vmem:[%s293 + $0x50] sm:$0xff] %v868
        %885 = vst [vmem:[%s293 + $0x58] sm:$0xff] %v869
        %886 = vst [vmem:[%s293 + $0x60] sm:$0xff] %v870
        %887 = vst [vmem:[%s293 + $0x68] sm:$0xff] %v871
        %888 = vst [vmem:[%s293 + $0x70] sm:$0xff] %v872
        %889 = vst [vmem:[%s293 + $0x78] sm:$0xff] %v873
        %s890 = sand.u32 %s166, 1
        %s891 = scalar_lea.sflag [#allocation4], %s890
        %s892 = sand.u32 %s166, 1
        %s893 = smul.addr %s892, 128
        %s894 = scalar_lea.vmem [#allocation7], %s893
        // Predicated region
        $region53: #{gin_forward.1} parent=43 // pred_check
          %p895 = pneg %p176
        $region54: #{gin_forward.1} parent=43 // pred_check_branch
          %897 = sbr.rel (%p895) target = $region56
        $region55: #{gin_forward.1} parent=43 // pred_region
          %899 = vsyncadd %s891, 0
          %s900 = smul.addr %s22, 16
          %s901 = smul.addr %s900, 8
          %s902 = scalar_lea.hbm %s6, %s901
          %s903 = sshll.u32 %s894, 4
          %s904 = int_to_ptr.vmem [resolvable:$true] %s903
          %s905 = sshll.u32 %s902, 4
          %s906 = int_to_ptr.hbm [resolvable:$true] %s905
          %911 = dma.vmem_to_hbm [thread:$0]  %s904, 2048, %s906, %s891, 128, 128, 8
        $region56: #{gin_forward.1} parent=43 // pred_fallthru
          _
      $region44: #{gin_forward.1} parent=5 // pred_fallthru
        _
      %p912 = scmp.le.s32.totalorder 2, %s17
      // Predicated region
      $region57: #{gin_forward.1} parent=5 // pred_check
        %p913 = pneg %p912
      $region58: #{gin_forward.1} parent=5 // pred_check_branch
        %915 = sbr.rel (%p913) target = $region60
      $region59: #{gin_forward.1} parent=5 // pred_region
        %s916 = ssub.s32 %s17, 2
        // Predicated region
        $region61: #{gin_forward.1} parent=59 // pred_check
          %p917 = pneg %p182
        $region62: #{gin_forward.1} parent=59 // pred_check_branch
          %919 = sbr.rel (%p917) target = $region64
        $region63: #{gin_forward.1} parent=59 // pred_region
          %s920 = sand.u32 %s167, 1
          %s921 = scalar_lea.sflag [#allocation4], %s920
          %s922 = sand.u32 %s167, 1
          %s923 = smul.addr %s922, 128
          %s924 = scalar_lea.vmem [#allocation7], %s923
          %926 = dma.done %s921, 2048
        $region64: #{gin_forward.1} parent=59 // pred_fallthru
          _
      $region60: #{gin_forward.1} parent=5 // pred_fallthru
        _
    $region6: #{gin_forward.1} parent=1 // loop_footer
      %s21 = sadd.s32 1, %s17
    $region7: #{gin_forward.1} parent=1 // loop_footer_branch
      %16 = sbr.rel target = $region3
    $region8: #{gin_forward.1} parent=1 // loop_exit
      _
    %927 = vsyncpa [#allocation3], 1
    %s928 = scalar_lea.sflag [#allocation3], 1
    %929 = vsyncpa %s928, 1
    %930 = vsyncpa [#allocation6], 1
    %931 = vsyncpa [#allocation4], 1
    %s932 = scalar_lea.sflag [#allocation4], 1
    %933 = vsyncpa %s932, 1

</llo_original>
